<compile_context>
chip_gen: v6e
topology: v6e:2x2x1
jax: 0.10.0
libtpu: 0.0.40
codegen_flags: <defaults>
</compile_context>

<pallas_src>
import functools

import jax
import jax.numpy as jnp
from jax.experimental import pallas as pl
from jax.experimental.pallas import tpu as pltpu

EPS = 1e-5                       # nn.BatchNorm1d default
_INV_SQRT2 = 0.7071067811865476


def _round_up(v: int, m: int) -> int:
    return (v + m - 1) // m * m


# ---------------------------------------------------------------------------
# Pass 1: BatchNorm1d batch statistics -> folded (scale, shift) vectors.
# ---------------------------------------------------------------------------
def _bn_stats_kernel(n_rows, x_ref, gamma_ref, beta_ref,
                     scale_ref, shift_ref, sum_ref, sq_ref):
    i = pl.program_id(0)

    @pl.when(i == 0)
    def _():
        sum_ref[...] = jnp.zeros_like(sum_ref)
        sq_ref[...] = jnp.zeros_like(sq_ref)

    x = x_ref[...].astype(jnp.float32)
    sum_ref[...] += jnp.sum(x, axis=0, keepdims=True)
    sq_ref[...] += jnp.sum(x * x, axis=0, keepdims=True)

    @pl.when(i == pl.num_programs(0) - 1)
    def _():
        inv_n = jnp.float32(1.0 / n_rows)          # zero-padded rows add nothing
        mean = sum_ref[...] * inv_n
        var = sq_ref[...] * inv_n - mean * mean    # biased variance (training BN)
        inv_std = jax.lax.rsqrt(var + jnp.float32(EPS))
        scale = inv_std * gamma_ref[...]
        scale_ref[...] = scale
        shift_ref[...] = beta_ref[...] - mean * scale


# ---------------------------------------------------------------------------
# Pass 2: (x * scale + shift) @ W1 + b1 -> GELU -> @ W2 + b2, row-tiled.
# ---------------------------------------------------------------------------
def _ffblock_kernel(x_ref, scale_ref, shift_ref, w1_ref, b1_ref,
                    w2_ref, b2_ref, o_ref):
    x = x_ref[...].astype(jnp.float32)
    xn = x * scale_ref[...] + shift_ref[...]             # folded BN affine (VPU)

    h = jnp.dot(xn.astype(jnp.bfloat16), w1_ref[...],    # bf16 MXU, f32 acc
                preferred_element_type=jnp.float32) + b1_ref[...]
    a = 0.5 * h * (1.0 + jax.lax.erf(h * jnp.float32(_INV_SQRT2)))  # exact GELU

    out = jnp.dot(a.astype(jnp.bfloat16), w2_ref[...],
                  preferred_element_type=jnp.float32) + b2_ref[...]
    o_ref[...] = out.astype(o_ref.dtype)


def _vmem_bytes(tm, hp, ip):
    stream = 2 * 2 * tm * hp * 4          # double-buffered x-in + out tiles (f32)
    weights = 2 * hp * ip * 2             # resident bf16 w1 + w2
    vectors = (4 * hp + 2 * ip) * 4       # scale/shift/b2 + b1 (+ headroom)
    interm = 3 * tm * ip * 4              # in-kernel h / gelu temporaries
    return stream + weights + vectors + interm


def ff_block(x, gamma, beta, w1, b1, w2, b2, *, tm=None):
    """x: (B, T, H). w1: (H, I) (= feed_forward.weight.T), w2: (I, H)."""
    B, T, H = x.shape
    I = w1.shape[1]
    N = B * T

    Hp = _round_up(H, 128)                # lane-dense last dims
    Ip = _round_up(I, 128)

    # Row tile: largest <=512 that keeps the working set inside a ~40 MiB
    # (v7x-safe) scoped-VMEM budget; re-derived per problem size.
    if tm is None:
        tm = min(512, _round_up(N, 8))
        while tm > 8 and _vmem_bytes(tm, Hp, Ip) > 40 * 1024 * 1024:
            tm //= 2
    Np = _round_up(N, tm)
    n_tiles = Np // tm

    xf = jnp.pad(x.reshape(N, H).astype(jnp.float32),
                 ((0, Np - N), (0, Hp - H)))
    gamma_p = jnp.pad(gamma.astype(jnp.float32), (0, Hp - H)).reshape(1, Hp)
    beta_p = jnp.pad(beta.astype(jnp.float32), (0, Hp - H)).reshape(1, Hp)
    w1_p = jnp.pad(w1, ((0, Hp - H), (0, Ip - I))).astype(jnp.bfloat16)
    b1_p = jnp.pad(b1.astype(jnp.float32), (0, Ip - I)).reshape(1, Ip)
    w2_p = jnp.pad(w2, ((0, Ip - I), (0, Hp - H))).astype(jnp.bfloat16)
    b2_p = jnp.pad(b2.astype(jnp.float32), (0, Hp - H)).reshape(1, Hp)

    vec_h = pl.BlockSpec((1, Hp), lambda i: (0, 0))       # resident vectors
    vec_i = pl.BlockSpec((1, Ip), lambda i: (0, 0))
    row_tile = pl.BlockSpec((tm, Hp), lambda i: (i, 0))   # streaming rows

    # ---- pass 1: BN batch statistics (reduction over all rows) ----
    scale, shift = pl.pallas_call(
        functools.partial(_bn_stats_kernel, N),
        out_shape=(jax.ShapeDtypeStruct((1, Hp), jnp.float32),
                   jax.ShapeDtypeStruct((1, Hp), jnp.float32)),
        grid_spec=pltpu.PrefetchScalarGridSpec(
            num_scalar_prefetch=0,
            grid=(n_tiles,),
            in_specs=[row_tile, vec_h, vec_h],
            out_specs=(vec_h, vec_h),
            scratch_shapes=[pltpu.VMEM((1, Hp), jnp.float32),
                            pltpu.VMEM((1, Hp), jnp.float32)]),
        compiler_params=pltpu.CompilerParams(
            dimension_semantics=("arbitrary",)),
    )(xf, gamma_p, beta_p)

    # ---- pass 2: row-parallel matmul pipeline with resident weights ----
    need = _vmem_bytes(tm, Hp, Ip)
    cp = dict(dimension_semantics=("parallel",))
    if need > 32 * 1024 * 1024:           # only raise scoped VMEM if required
        cp["vmem_limit_bytes"] = min(int(need * 5 // 4), 64 * 1024 * 1024)

    out = pl.pallas_call(
        _ffblock_kernel,
        out_shape=jax.ShapeDtypeStruct((Np, Hp), x.dtype),
        grid_spec=pltpu.PrefetchScalarGridSpec(
            num_scalar_prefetch=0,
            grid=(n_tiles,),
            in_specs=[row_tile, vec_h, vec_h,
                      pl.BlockSpec((Hp, Ip), lambda i: (0, 0)),   # w1 resident
                      vec_i,
                      pl.BlockSpec((Ip, Hp), lambda i: (0, 0)),   # w2 resident
                      vec_h],
            out_specs=row_tile),
        compiler_params=pltpu.CompilerParams(**cp),
    )(xf, scale, shift, w1_p, b1_p, w2_p, b2_p)

    return out[:N, :H].reshape(B, T, H)


def ff_block_ref(x, gamma, beta, w1, b1, w2, b2):
    """Pure-JAX f32 reference mirroring the PyTorch forward (training-mode BN)."""
    B, T, H = x.shape
    xf = x.reshape(B * T, H)
    mean = jnp.mean(xf, axis=0, keepdims=True)
    var = jnp.mean((xf - mean) ** 2, axis=0, keepdims=True)
    xn = (xf - mean) / jnp.sqrt(var + EPS) * gamma + beta
    h = xn @ w1 + b1
    a = 0.5 * h * (1.0 + jax.lax.erf(h / jnp.sqrt(2.0)))
    out = a @ w2 + b2
    return out.reshape(B, T, H)


if __name__ == "__main__":
    # Small shapes consistent with the module: batch=2, seq=8, hidden=32, inter=64
    B, T, H, I = 2, 8, 32, 64

    key = jax.random.PRNGKey(0)
    kx, kw1, kb1, kw2, kb2 = jax.random.split(key, 5)

    x = jax.random.normal(kx, (B, T, H), dtype=jnp.float32)

    # Deterministic parameter init (torch-like uniform(-1/sqrt(fan_in), ...)).
    lim1 = 1.0 / jnp.sqrt(H)
    lim2 = 1.0 / jnp.sqrt(I)
    w1 = jax.random.uniform(kw1, (H, I), jnp.float32, -lim1, lim1)  # feed_forward.weight.T
    b1 = jax.random.uniform(kb1, (I,), jnp.float32, -lim1, lim1)
    w2 = jax.random.uniform(kw2, (I, H), jnp.float32, -lim2, lim2)  # output_dense.weight.T
    b2 = jax.random.uniform(kb2, (H,), jnp.float32, -lim2, lim2)
    gamma = jnp.ones((H,), jnp.float32)   # BatchNorm1d weight default
    beta = jnp.zeros((H,), jnp.float32)   # BatchNorm1d bias default

    out = jax.block_until_ready(ff_block(x, gamma, beta, w1, b1, w2, b2))
    ref = ff_block_ref(x, gamma, beta, w1, b1, w2, b2)

    assert out.shape == (B, T, H)
    # bf16 MXU operands (f32 accumulation) -> loosened tolerance vs f32 reference.
    assert jnp.allclose(out, ref, atol=3e-2, rtol=3e-2), "mismatch vs reference"
    # TODO(synk): BatchNorm1d running_mean/running_var buffer updates (training
    # side effects) are not modeled; only the forward output is produced.
    print("KERNEL_OK")
</pallas_src>

<mosaic_0001>
module attributes {stable_mosaic.version = 11 : i64} {
  func.func @_bn_stats_kernel(%arg0: i32, %arg1: memref<16x128xf32, #tpu.memory_space<vmem>>, %arg2: memref<1x128xf32, #tpu.memory_space<vmem>>, %arg3: memref<1x128xf32, #tpu.memory_space<vmem>>, %arg4: memref<1x128xf32, #tpu.memory_space<vmem>>, %arg5: memref<1x128xf32, #tpu.memory_space<vmem>>, %arg6: memref<1x128xf32, #tpu.memory_space<vmem>>, %arg7: memref<1x128xf32, #tpu.memory_space<vmem>>) attributes {dimension_semantics = [#tpu.dimension_semantics<arbitrary>], iteration_bounds = array<i64: 1>, scalar_prefetch = 0 : i64, scratch_operands = 2 : i64, tpu.core_type = #tpu.core_type<tc>, window_params = [{transform_indices = @transform_0, window_bounds = array<i64: 16, 128>}, {pipeline_mode = #tpu.pipeline_mode<synchronous>, transform_indices = @transform_1, window_bounds = array<i64: 1, 128>}, {pipeline_mode = #tpu.pipeline_mode<synchronous>, transform_indices = @transform_2, window_bounds = array<i64: 1, 128>}, {pipeline_mode = #tpu.pipeline_mode<synchronous>, transform_indices = @transform_3, window_bounds = array<i64: 1, 128>}, {pipeline_mode = #tpu.pipeline_mode<synchronous>, transform_indices = @transform_4, window_bounds = array<i64: 1, 128>}]} {
    %c0_i32 = arith.constant 0 : i32
    %0 = arith.cmpi eq, %arg0, %c0_i32 : i32
    %1 = arith.extui %0 : i1 to i32
    %c0_i32_0 = arith.constant 0 : i32
    %2 = arith.cmpi ne, %1, %c0_i32_0 : i32
    scf.if %2 {
      %cst_13 = arith.constant 0.000000e+00 : f32
      %18 = vector.broadcast %cst_13 : f32 to vector<1x128xf32>
      %c0_14 = arith.constant 0 : index
      %c0_15 = arith.constant 0 : index
      %19 = vector.load %arg6[%c0_14, %c0_15] : memref<1x128xf32, #tpu.memory_space<vmem>>, vector<1x128xf32>
      tpu.vector_store %arg6[%c0_14, %c0_15], %18 {strides = array<i32>} : memref<1x128xf32, #tpu.memory_space<vmem>>, vector<1x128xf32>,
      %cst_16 = arith.constant 0.000000e+00 : f32
      %20 = vector.broadcast %cst_16 : f32 to vector<1x128xf32>
      %c0_17 = arith.constant 0 : index
      %c0_18 = arith.constant 0 : index
      %21 = vector.load %arg7[%c0_17, %c0_18] : memref<1x128xf32, #tpu.memory_space<vmem>>, vector<1x128xf32>
      tpu.vector_store %arg7[%c0_17, %c0_18], %20 {strides = array<i32>} : memref<1x128xf32, #tpu.memory_space<vmem>>, vector<1x128xf32>,
    } else {
    }
    %c0 = arith.constant 0 : index
    %c0_1 = arith.constant 0 : index
    %3 = vector.load %arg1[%c0, %c0_1] : memref<16x128xf32, #tpu.memory_space<vmem>>, vector<16x128xf32>
    %c0_2 = arith.constant 0 : index
    %c0_3 = arith.constant 0 : index
    %4 = vector.load %arg6[%c0_2, %c0_3] : memref<1x128xf32, #tpu.memory_space<vmem>>, vector<1x128xf32>
    %cst = arith.constant dense<0.000000e+00> : vector<128xf32>
    %5 = vector.multi_reduction <add>, %3, %cst [0] : vector<16x128xf32> to vector<128xf32>
    %6 = vector.shape_cast %5 : vector<128xf32> to vector<1x128xf32>
    %7 = arith.addf %4, %6 : vector<1x128xf32>
    %c0_4 = arith.constant 0 : index
    %c0_5 = arith.constant 0 : index
    %8 = vector.load %arg6[%c0_4, %c0_5] : memref<1x128xf32, #tpu.memory_space<vmem>>, vector<1x128xf32>
    tpu.vector_store %arg6[%c0_4, %c0_5], %7 {strides = array<i32>} : memref<1x128xf32, #tpu.memory_space<vmem>>, vector<1x128xf32>,
    %c0_6 = arith.constant 0 : index
    %c0_7 = arith.constant 0 : index
    %9 = vector.load %arg7[%c0_6, %c0_7] : memref<1x128xf32, #tpu.memory_space<vmem>>, vector<1x128xf32>
    %10 = arith.mulf %3, %3 : vector<16x128xf32>
    %cst_8 = arith.constant dense<0.000000e+00> : vector<128xf32>
    %11 = vector.multi_reduction <add>, %10, %cst_8 [0] : vector<16x128xf32> to vector<128xf32>
    %12 = vector.shape_cast %11 : vector<128xf32> to vector<1x128xf32>
    %13 = arith.addf %9, %12 : vector<1x128xf32>
    %c0_9 = arith.constant 0 : index
    %c0_10 = arith.constant 0 : index
    %14 = vector.load %arg7[%c0_9, %c0_10] : memref<1x128xf32, #tpu.memory_space<vmem>>, vector<1x128xf32>
    tpu.vector_store %arg7[%c0_9, %c0_10], %13 {strides = array<i32>} : memref<1x128xf32, #tpu.memory_space<vmem>>, vector<1x128xf32>,
    %c0_i32_11 = arith.constant 0 : i32
    %15 = arith.cmpi eq, %arg0, %c0_i32_11 : i32
    %16 = arith.extui %15 : i1 to i32
    %c0_i32_12 = arith.constant 0 : i32
    %17 = arith.cmpi ne, %16, %c0_i32_12 : i32
    scf.if %17 {
      %c0_13 = arith.constant 0 : index
      %c0_14 = arith.constant 0 : index
      %18 = vector.load %arg6[%c0_13, %c0_14] : memref<1x128xf32, #tpu.memory_space<vmem>>, vector<1x128xf32>
      %cst_15 = arith.constant 6.250000e-02 : f32
      %19 = vector.broadcast %cst_15 : f32 to vector<1x128xf32>
      %20 = arith.mulf %18, %19 : vector<1x128xf32>
      %c0_16 = arith.constant 0 : index
      %c0_17 = arith.constant 0 : index
      %21 = vector.load %arg7[%c0_16, %c0_17] : memref<1x128xf32, #tpu.memory_space<vmem>>, vector<1x128xf32>
      %cst_18 = arith.constant 6.250000e-02 : f32
      %22 = vector.broadcast %cst_18 : f32 to vector<1x128xf32>
      %23 = arith.mulf %21, %22 : vector<1x128xf32>
      %24 = arith.mulf %20, %20 : vector<1x128xf32>
      %25 = arith.subf %23, %24 : vector<1x128xf32>
      %cst_19 = arith.constant 9.99999974E-6 : f32
      %26 = vector.broadcast %cst_19 : f32 to vector<1x128xf32>
      %27 = arith.addf %25, %26 : vector<1x128xf32>
      %28 = math.rsqrt %27 : vector<1x128xf32>
      %c0_20 = arith.constant 0 : index
      %c0_21 = arith.constant 0 : index
      %29 = vector.load %arg2[%c0_20, %c0_21] : memref<1x128xf32, #tpu.memory_space<vmem>>, vector<1x128xf32>
      %30 = arith.mulf %28, %29 : vector<1x128xf32>
      %c0_22 = arith.constant 0 : index
      %c0_23 = arith.constant 0 : index
      %31 = vector.load %arg4[%c0_22, %c0_23] : memref<1x128xf32, #tpu.memory_space<vmem>>, vector<1x128xf32>
      tpu.vector_store %arg4[%c0_22, %c0_23], %30 {strides = array<i32>} : memref<1x128xf32, #tpu.memory_space<vmem>>, vector<1x128xf32>,
      %c0_24 = arith.constant 0 : index
      %c0_25 = arith.constant 0 : index
      %32 = vector.load %arg3[%c0_24, %c0_25] : memref<1x128xf32, #tpu.memory_space<vmem>>, vector<1x128xf32>
      %33 = arith.mulf %20, %30 : vector<1x128xf32>
      %34 = arith.subf %32, %33 : vector<1x128xf32>
      %c0_26 = arith.constant 0 : index
      %c0_27 = arith.constant 0 : index
      %35 = vector.load %arg5[%c0_26, %c0_27] : memref<1x128xf32, #tpu.memory_space<vmem>>, vector<1x128xf32>
      tpu.vector_store %arg5[%c0_26, %c0_27], %34 {strides = array<i32>} : memref<1x128xf32, #tpu.memory_space<vmem>>, vector<1x128xf32>,
    } else {
    }
    return
  }
  func.func @transform_0(%arg0: i32) -> (i32, i32) {
    %c0_i32 = arith.constant 0 : i32
    %c0_i32_0 = arith.constant 0 : i32
    return %arg0, %c0_i32 : i32, i32
  }
  func.func @transform_1(%arg0: i32) -> (i32, i32) {
    %c0_i32 = arith.constant 0 : i32
    %c0_i32_0 = arith.constant 0 : i32
    %c0_i32_1 = arith.constant 0 : i32
    return %c0_i32, %c0_i32_0 : i32, i32
  }
  func.func @transform_2(%arg0: i32) -> (i32, i32) {
    %c0_i32 = arith.constant 0 : i32
    %c0_i32_0 = arith.constant 0 : i32
    %c0_i32_1 = arith.constant 0 : i32
    return %c0_i32, %c0_i32_0 : i32, i32
  }
  func.func @transform_3(%arg0: i32) -> (i32, i32) {
    %c0_i32 = arith.constant 0 : i32
    %c0_i32_0 = arith.constant 0 : i32
    %c0_i32_1 = arith.constant 0 : i32
    return %c0_i32, %c0_i32_0 : i32, i32
  }
  func.func @transform_4(%arg0: i32) -> (i32, i32) {
    %c0_i32 = arith.constant 0 : i32
    %c0_i32_0 = arith.constant 0 : i32
    %c0_i32_1 = arith.constant 0 : i32
    return %c0_i32, %c0_i32_0 : i32, i32
  }
}

</mosaic_0001>

<llo_original>
// kernel: tpu_custom_call.1
$region0: #{tpu_custom_call.1}
  #allocation0 [shape = 'u32[]', space=smem, size = 0x4, offset = 0x4, fixed_abs, tag = 'smem constant byte address 0x4 - core index']
  #allocation1 [shape = 'u32[144,128]{1,0:T(1,128)}', space=vmem, size = 0x12000, scoped, tag = 'internal scratch']
  #allocation2 [shape = 'f32[1,128]{1,0:T(1,128)}', space=vmem, size = 0x200, scoped, tag = 'scratch operand']
  #allocation3 [shape = 'f32[1,128]{1,0:T(1,128)}', space=vmem, size = 0x200, scoped, tag = 'scratch operand']
  %s0 = inlined_call_operand.hbm [shape: f32[16,128], index: 0, kind: input, shape index: {}]
  %s1 = inlined_call_operand.vmem [shape: f32[1,128], index: 1, kind: input, shape index: {}]
  %s2 = inlined_call_operand.vmem [shape: f32[1,128], index: 2, kind: input, shape index: {}]
  %s3 = inlined_call_operand.hbm [shape: f32[1,128], index: 3, kind: output, shape index: {0}]
  %s4 = inlined_call_operand.hbm [shape: f32[1,128], index: 4, kind: output, shape index: {1}]
  %5 = xla_tuple %s3, %s4
  %s6 = sld [smem:[#allocation0]]
  $region42: #{tpu_custom_call.1} parent=0
    _
  %s8 = ssub.s32 1, %s6
  %s9 = scalar_select 0, %s8, %s6
  $region1: #{tpu_custom_call.1} parent=0
    #allocation4 [shape = 'u8[8192]{0}', space=vmem, size = 0x2000, scoped, tag = 'input window, operand 0, single buffered']
    #allocation5 [shape = 's32[1]{0}', space=sflag, size = 0x4, scoped, tag = 'scoped memory for tpu_custom_call.1']
    #allocation6 [shape = 's32[1]{0}', space=sflag, size = 0x4, scoped, tag = 'scoped memory for tpu_custom_call.1']
    #allocation7 [shape = 'u8[512]{0}', space=vmem, size = 0x400, scoped, tag = 'output window, operand 0, single buffered']
    #allocation8 [shape = 'u8[512]{0}', space=vmem, size = 0x400, scoped, tag = 'output window, operand 1, single buffered']
    #allocation9 [shape = 's32[1]{0}', space=sflag, size = 0x4, scoped, tag = 'scoped memory for tpu_custom_call.1']
    %10 = vsyncpa [#allocation5], 0
    %11 = vsyncpa [#allocation6], 0
    %12 = vsyncpa [#allocation9], 0
    // Predicated region
    $region2: #{tpu_custom_call.1} parent=1 // pred_check
      _
    $region3: #{tpu_custom_call.1} parent=1 // pred_check_branch
      %14 = sbr.rel (0) target = $region5
    $region4: #{tpu_custom_call.1} parent=1 // pred_region
      %s16 = ssub.s32 256, 256
      %17 = vsyncadd [#allocation5], %s16
      %s18 = sshll.u32 [#allocation4], 4
      %s19 = int_to_ptr.vmem [resolvable:$true] %s18
      %24 = dma.hbm_to_vmem [thread:$0]  %s0, 256, %s19, [#allocation5], 128, 128, 8
    $region5: #{tpu_custom_call.1} parent=1 // pred_fallthru
      _
    // Predicated region
    $region6: #{tpu_custom_call.1} parent=1 // pred_check
      _
    $region7: #{tpu_custom_call.1} parent=1 // pred_check_branch
      %26 = sbr.rel (0) target = $region9
    $region8: #{tpu_custom_call.1} parent=1 // pred_region
      _
    $region9: #{tpu_custom_call.1} parent=1 // pred_fallthru
      _
    // Predicated region
    $region10: #{tpu_custom_call.1} parent=1 // pred_check
      _
    $region11: #{tpu_custom_call.1} parent=1 // pred_check_branch
      %28 = sbr.rel (0) target = $region13
    $region12: #{tpu_custom_call.1} parent=1 // pred_region
      _
    $region13: #{tpu_custom_call.1} parent=1 // pred_fallthru
      _
    // Predicated region
    $region14: #{tpu_custom_call.1} parent=1 // pred_check
      _
    $region15: #{tpu_custom_call.1} parent=1 // pred_check_branch
      %30 = sbr.rel (0) target = $region17
    $region16: #{tpu_custom_call.1} parent=1 // pred_region
      %31 = dma.done [#allocation5], 256
    $region17: #{tpu_custom_call.1} parent=1 // pred_fallthru
      _
    %p32 = scmp.eq.s32.totalorder 0, 0
    // Predicated region
    $region18: #{tpu_custom_call.1} parent=1 // pred_check
      %p33 = pneg %p32
    $region19: #{tpu_custom_call.1} parent=1 // pred_check_branch
      %35 = sbr.rel (%p33) target = $region21
    $region20: #{tpu_custom_call.1} parent=1 // pred_region
      %36 = vst [vmem:[#allocation2] sm:$0x1] 0.0
      %37 = vst [vmem:[#allocation3] sm:$0x1] 0.0
    $region21: #{tpu_custom_call.1} parent=1 // pred_fallthru
      _
    %v38 = vld [vmem:[#allocation4] sm:$0xff]
    %v39 = vld [vmem:[#allocation4 + $0x8] sm:$0xff]
    %v40 = vld [vmem:[#allocation2] sm:$0x1]
    %v41 = vadd.f32 %v38, %v39
    %v42 = vrot.slane %v41, 4
    %v43 = vadd.f32 %v41, %v42
    %v44 = vrot.slane %v43, 2
    %v45 = vadd.f32 %v43, %v44
    %v46 = vrot.slane %v45, 1
    %v47 = vadd.f32 %v45, %v46
    %v48 = vadd.f32 %v40, %v47
    %49 = vst [vmem:[#allocation2] sm:$0x1] %v48
    %v50 = vld [vmem:[#allocation3] sm:$0x1]
    %v51 = vmul.f32 %v38, %v38
    %v52 = vmul.f32 %v39, %v39
    %v53 = vadd.f32 %v51, %v52
    %v54 = vrot.slane %v53, 4
    %v55 = vadd.f32 %v53, %v54
    %v56 = vrot.slane %v55, 2
    %v57 = vadd.f32 %v55, %v56
    %v58 = vrot.slane %v57, 1
    %v59 = vadd.f32 %v57, %v58
    %v60 = vadd.f32 %v50, %v59
    %61 = vst [vmem:[#allocation3] sm:$0x1] %v60
    // Predicated region
    $region22: #{tpu_custom_call.1} parent=1 // pred_check
      %p62 = pneg %p32
    $region23: #{tpu_custom_call.1} parent=1 // pred_check_branch
      %64 = sbr.rel (%p62) target = $region25
    $region24: #{tpu_custom_call.1} parent=1 // pred_region
      %v65 = vld [vmem:[#allocation2] sm:$0x1]
      %v66 = vmul.f32 %v65, 0.0625
      %v67 = vld [vmem:[#allocation3] sm:$0x1]
      %v68 = vmul.f32 %v67, 0.0625
      %v69 = vmul.f32 %v66, %v66
      %v70 = vsub.f32 %v68, %v69
      %v71 = vadd.f32 %v70, 1e-05
      %v72 = vrsqrt.pop %v71
      %v73 = vld [vmem:[%s1] sm:$0x1]
      %v74 = vmul.f32 %v72, %v73
      %75 = vst [vmem:[#allocation7] sm:$0x1] %v74
      %v76 = vld [vmem:[%s2] sm:$0x1]
      %v77 = vmul.f32 %v66, %v74
      %v78 = vsub.f32 %v76, %v77
      %79 = vst [vmem:[#allocation8] sm:$0x1] %v78
    $region25: #{tpu_custom_call.1} parent=1 // pred_fallthru
      _
    // Predicated region
    $region26: #{tpu_custom_call.1} parent=1 // pred_check
      _
    $region27: #{tpu_custom_call.1} parent=1 // pred_check_branch
      %81 = sbr.rel (0) target = $region29
    $region28: #{tpu_custom_call.1} parent=1 // pred_region
      %s83 = ssub.s32 16, 16
      %84 = vsyncadd [#allocation6], %s83
      %s86 = sshll.u32 [#allocation7], 4
      %s87 = int_to_ptr.vmem [resolvable:$true] %s86
      %89 = dma.vmem_to_hbm [thread:$0]  %s87, 16, %s3, [#allocation6]
    $region29: #{tpu_custom_call.1} parent=1 // pred_fallthru
      _
    // Predicated region
    $region30: #{tpu_custom_call.1} parent=1 // pred_check
      _
    $region31: #{tpu_custom_call.1} parent=1 // pred_check_branch
      %91 = sbr.rel (0) target = $region33
    $region32: #{tpu_custom_call.1} parent=1 // pred_region
      %s93 = ssub.s32 16, 16
      %94 = vsyncadd [#allocation9], %s93
      %s96 = sshll.u32 [#allocation8], 4
      %s97 = int_to_ptr.vmem [resolvable:$true] %s96
      %99 = dma.vmem_to_hbm [thread:$0]  %s97, 16, %s4, [#allocation9]
    $region33: #{tpu_custom_call.1} parent=1 // pred_fallthru
      _
    // Predicated region
    $region34: #{tpu_custom_call.1} parent=1 // pred_check
      _
    $region35: #{tpu_custom_call.1} parent=1 // pred_check_branch
      %101 = sbr.rel (0) target = $region37
    $region36: #{tpu_custom_call.1} parent=1 // pred_region
      %102 = dma.done [#allocation6], 16
    $region37: #{tpu_custom_call.1} parent=1 // pred_fallthru
      _
    // Predicated region
    $region38: #{tpu_custom_call.1} parent=1 // pred_check
      _
    $region39: #{tpu_custom_call.1} parent=1 // pred_check_branch
      %104 = sbr.rel (0) target = $region41
    $region40: #{tpu_custom_call.1} parent=1 // pred_region
      %105 = dma.done [#allocation9], 16
    $region41: #{tpu_custom_call.1} parent=1 // pred_fallthru
      _
    %106 = vsyncpa [#allocation5], 1
    %107 = vsyncpa [#allocation6], 1
    %108 = vsyncpa [#allocation9], 1

</llo_original>
